<compile_context>
chip_gen: v5e
topology: v5e:2x2
jax: 0.10.0
libtpu: 0.0.40
codegen_flags: <defaults>
</compile_context>

<pallas_src>
import jax
import jax.numpy as jnp
from jax import lax
from jax.experimental import pallas as pl
from jax.experimental.pallas import tpu as pltpu

_LANE = 128
_SUBLANE = 8
_CHUNK_ROWS = 512          # rows per inner compute chunk (bounds live h)
_MAX_BATCH_TILE = 16384    # keeps double-buffered padded blocks < ~32 MiB


def _round_up(x, m):
    return ((x + m - 1) // m) * m


def _make_mlp_kernel(tb, chunk):
    """Build a kernel for a (tb, nb_in) x-block, processed in `chunk`-row steps."""
    n_full, rem = divmod(tb, chunk)

    def kernel(x_ref, w1_ref, b1_ref, w2_ref, b2_ref, o_ref):
        # Weights/biases are tiny and block-invariant: load once per grid step.
        w1 = w1_ref[...]
        b1 = b1_ref[...]
        w2 = w2_ref[...]
        b2 = b2_ref[...]

        def rows(start, n_rows):
            xs = x_ref[pl.ds(start, n_rows), :]
            # Linear 1 (bf16 MXU, f32 accumulate) + bias + ReLU (lane-dense H)
            h = jnp.dot(xs, w1, preferred_element_type=jnp.float32)
            h = jnp.maximum(h + b1, 0.0)
            # Linear 2 (bf16 MXU, f32 accumulate) + bias
            y = jnp.dot(h.astype(w2.dtype), w2,
                        preferred_element_type=jnp.float32)
            o_ref[pl.ds(start, n_rows), :] = (y + b2).astype(o_ref.dtype)

        if n_full > 0:
            def body(c, carry):
                rows(pl.multiple_of(c * chunk, chunk), chunk)
                return carry
            lax.fori_loop(0, n_full, body, 0)
        if rem > 0:
            rows(n_full * chunk, rem)      # static start & static size

    return kernel


def net_forward(x, w1, b1, w2, b2, *, batch_tile=8192):
    """Fused 2-layer MLP forward pass (== Net.forward).

    x:  (..., nb_in)  -> flattened to (-1, nb_in) like `x.view(-1, nb_in)`
    w1: (nb_in, H),  b1: (1, H)
    w2: (H, out),    b2: (1, out)
    returns (batch, out) float32
    """
    nb_in, H = w1.shape
    O = w2.shape[1]
    x2d = x.reshape(-1, nb_in)             # the .view(-1, nb_in); detach is a no-op here
    B = x2d.shape[0]

    # ---- Pad hidden dim to a multiple of 128 lanes (zeros -> identical math).
    Hp = _round_up(max(H, _LANE), _LANE)
    if Hp != H:
        w1 = jnp.pad(w1, ((0, 0), (0, Hp - H)))
        b1 = jnp.pad(b1, ((0, 0), (0, Hp - H)))
        w2 = jnp.pad(w2, ((0, Hp - H), (0, 0)))

    # ---- Batch tiling: few fat grid steps, batch padding <= 7 rows per step.
    max_tile = max(_SUBLANE, min(int(batch_tile), _MAX_BATCH_TILE))
    n_steps = pl.cdiv(B, max_tile)
    TB = _round_up(pl.cdiv(B, n_steps), _SUBLANE)
    Bp = n_steps * TB
    if Bp != B:
        x2d = jnp.pad(x2d, ((0, Bp - B), (0, 0)))
    chunk = min(TB, _CHUNK_ROWS)

    # ---- bf16 on the HBM/MXU path, f32 biases + accumulation.
    xb = x2d.astype(jnp.bfloat16)
    w1b = w1.astype(jnp.bfloat16)
    w2b = w2.astype(jnp.bfloat16)
    b1f = b1.astype(jnp.float32)
    b2f = b2.astype(jnp.float32)

    # ---- VMEM budget (lane-padded blocks, double-buffered) + headroom.
    x_buf = TB * _LANE * 2          # (TB, nb_in) bf16, lanes padded to 128
    o_buf = TB * _LANE * 4          # (TB, O) f32, lanes padded to 128
    vmem_limit = int(min(max(2 * (x_buf + o_buf) + (6 << 20), 32 << 20), 48 << 20))

    cost = pl.CostEstimate(
        flops=2 * Bp * (nb_in * Hp + Hp * O),
        transcendentals=0,
        bytes_accessed=(xb.size * 2 + w1b.size * 2 + w2b.size * 2
                        + b1f.size * 4 + b2f.size * 4 + Bp * O * 4),
    )

    out = pl.pallas_call(
        _make_mlp_kernel(TB, chunk),
        out_shape=jax.ShapeDtypeStruct((Bp, O), jnp.float32),
        grid=(n_steps,),
        in_specs=[
            pl.BlockSpec((TB, nb_in), lambda i: (i, 0)),   # x tile per grid step
            pl.BlockSpec((nb_in, Hp), lambda i: (0, 0)),   # weights VMEM-resident
            pl.BlockSpec((1, Hp), lambda i: (0, 0)),
            pl.BlockSpec((Hp, O), lambda i: (0, 0)),
            pl.BlockSpec((1, O), lambda i: (0, 0)),
        ],
        out_specs=pl.BlockSpec((TB, O), lambda i: (i, 0)),
        compiler_params=pltpu.CompilerParams(
            dimension_semantics=("parallel",),             # megacore on v7x
            vmem_limit_bytes=vmem_limit,
        ),
        cost_estimate=cost,
    )(xb, w1b, b1f, w2b, b2f)

    return out[:B]


def init_params(key, nb_in, nb_out, hidden=100):
    """Deterministic init mimicking nn.Linear default (U[-1/sqrt(fan_in), +])."""
    k1, k2, k3, k4 = jax.random.split(key, 4)
    bound1 = 1.0 / jnp.sqrt(nb_in)
    bound2 = 1.0 / jnp.sqrt(hidden)
    w1 = jax.random.uniform(k1, (nb_in, hidden), jnp.float32, -bound1, bound1)
    b1 = jax.random.uniform(k2, (1, hidden), jnp.float32, -bound1, bound1)
    w2 = jax.random.uniform(k3, (hidden, nb_out), jnp.float32, -bound2, bound2)
    b2 = jax.random.uniform(k4, (1, nb_out), jnp.float32, -bound2, bound2)
    return w1, b1, w2, b2


def _ref_forward(x, w1, b1, w2, b2):
    nb_in = w1.shape[0]
    h = jnp.maximum(x.reshape(-1, nb_in) @ w1 + b1, 0.0)
    return h @ w2 + b2


if __name__ == "__main__":
    key = jax.random.PRNGKey(0)
    kx1, kx2, kp = jax.random.split(key, 3)

    nb_in, nb_out = 32, 4
    w1, b1, w2, b2 = init_params(kp, nb_in, nb_out)

    # Case 1: tiny batch with leading dims -> exercises the view(-1, nb_in) path.
    x_small = jax.random.normal(kx1, (2, 4, nb_in), jnp.float32)
    out_small = jax.block_until_ready(net_forward(x_small, w1, b1, w2, b2))
    ref_small = _ref_forward(x_small, w1, b1, w2, b2)
    assert out_small.shape == (8, nb_out)
    assert jnp.allclose(out_small, ref_small, atol=0.1, rtol=0.1), (
        f"case1 max abs err {jnp.max(jnp.abs(out_small - ref_small)):.4f}")

    # Case 2: one fat grid step; exercises the inner chunk loop + static remainder.
    x_mid = jax.random.normal(kx2, (1200, nb_in), jnp.float32)
    out_mid = jax.block_until_ready(net_forward(x_mid, w1, b1, w2, b2))
    ref_mid = _ref_forward(x_mid, w1, b1, w2, b2)
    assert jnp.allclose(out_mid, ref_mid, atol=0.1, rtol=0.1), (
        f"case2 max abs err {jnp.max(jnp.abs(out_mid - ref_mid)):.4f}")

    # Case 3: multi-step grid + batch padding path (small tile override).
    x_rag = x_mid[:1100]
    out_rag = jax.block_until_ready(
        net_forward(x_rag, w1, b1, w2, b2, batch_tile=512))
    ref_rag = _ref_forward(x_rag, w1, b1, w2, b2)
    assert jnp.allclose(out_rag, ref_rag, atol=0.1, rtol=0.1), (
        f"case3 max abs err {jnp.max(jnp.abs(out_rag - ref_rag)):.4f}")

    print("KERNEL_OK")
</pallas_src>

<mosaic_0001>
module attributes {stable_mosaic.version = 11 : i64} {
  func.func @kernel(%arg0: i32, %arg1: memref<8x32xbf16, #tpu.memory_space<vmem>>, %arg2: memref<32x128xbf16, #tpu.memory_space<vmem>>, %arg3: memref<1x128xf32, #tpu.memory_space<vmem>>, %arg4: memref<128x4xbf16, #tpu.memory_space<vmem>>, %arg5: memref<1x4xf32, #tpu.memory_space<vmem>>, %arg6: memref<8x4xf32, #tpu.memory_space<vmem>>) attributes {dimension_semantics = [#tpu.dimension_semantics<parallel>], iteration_bounds = array<i64: 1>, scalar_prefetch = 0 : i64, scratch_operands = 0 : i64, tpu.core_type = #tpu.core_type<tc>, window_params = [{transform_indices = @transform_0, window_bounds = array<i64: 8, 32>}, {pipeline_mode = #tpu.pipeline_mode<synchronous>, transform_indices = @transform_1, window_bounds = array<i64: 32, 128>}, {pipeline_mode = #tpu.pipeline_mode<synchronous>, transform_indices = @transform_2, window_bounds = array<i64: 1, 128>}, {pipeline_mode = #tpu.pipeline_mode<synchronous>, transform_indices = @transform_3, window_bounds = array<i64: 128, 4>}, {pipeline_mode = #tpu.pipeline_mode<synchronous>, transform_indices = @transform_4, window_bounds = array<i64: 1, 4>}, {transform_indices = @transform_5, window_bounds = array<i64: 8, 4>}]} {
    %c0 = arith.constant 0 : index
    %c0_0 = arith.constant 0 : index
    %0 = vector.load %arg2[%c0, %c0_0] : memref<32x128xbf16, #tpu.memory_space<vmem>>, vector<32x128xbf16>
    %c0_1 = arith.constant 0 : index
    %c0_2 = arith.constant 0 : index
    %1 = vector.load %arg3[%c0_1, %c0_2] : memref<1x128xf32, #tpu.memory_space<vmem>>, vector<1x128xf32>
    %c0_3 = arith.constant 0 : index
    %c0_4 = arith.constant 0 : index
    %2 = vector.load %arg4[%c0_3, %c0_4] : memref<128x4xbf16, #tpu.memory_space<vmem>>, vector<128x4xbf16>
    %c0_5 = arith.constant 0 : index
    %c0_6 = arith.constant 0 : index
    %3 = vector.load %arg5[%c0_5, %c0_6] : memref<1x4xf32, #tpu.memory_space<vmem>>, vector<1x4xf32>
    %c0_i32 = arith.constant 0 : i32
    %c8_i32 = arith.constant 8 : i32
    %4 = arith.muli %c0_i32, %c8_i32 : i32
    %5 = tpu.assume_multiple %4, 8 : i32
    %6 = arith.index_cast %5 : i32 to index
    %c0_7 = arith.constant 0 : index
    %7 = vector.load %arg1[%6, %c0_7] : memref<8x32xbf16, #tpu.memory_space<vmem>>, vector<8x32xbf16>
    %cst = arith.constant dense<0.000000e+00> : vector<8x128xf32>
    %8 = tpu.matmul %7, %0, %cst {dimension_numbers = #tpu.dot_dimension_numbers<[1], [0], [0], [1], [0, 0, 1, 1], [], []>} : vector<8x32xbf16>, vector<32x128xbf16>, vector<8x128xf32> -> vector<8x128xf32>
    %9 = vector.broadcast %1 : vector<1x128xf32> to vector<8x128xf32>
    %10 = arith.addf %8, %9 : vector<8x128xf32>
    %cst_8 = arith.constant 0.000000e+00 : f32
    %11 = vector.broadcast %cst_8 : f32 to vector<8x128xf32>
    %12 = arith.maximumf %10, %11 : vector<8x128xf32>
    %13 = arith.truncf %12 : vector<8x128xf32> to vector<8x128xbf16>
    %cst_9 = arith.constant dense<0.000000e+00> : vector<8x4xf32>
    %14 = tpu.matmul %13, %2, %cst_9 {dimension_numbers = #tpu.dot_dimension_numbers<[1], [0], [0], [1], [0, 0, 1, 1], [], []>} : vector<8x128xbf16>, vector<128x4xbf16>, vector<8x4xf32> -> vector<8x4xf32>
    %15 = vector.broadcast %3 : vector<1x4xf32> to vector<8x4xf32>
    %16 = arith.addf %14, %15 : vector<8x4xf32>
    %17 = arith.index_cast %5 : i32 to index
    %c0_10 = arith.constant 0 : index
    %18 = vector.load %arg6[%17, %c0_10] : memref<8x4xf32, #tpu.memory_space<vmem>>, vector<8x4xf32>
    tpu.vector_store %arg6[%17, %c0_10], %16 {strides = array<i32>} : memref<8x4xf32, #tpu.memory_space<vmem>>, vector<8x4xf32>,
    %c1_i32 = arith.constant 1 : i32
    return
  }
  func.func @transform_0(%arg0: i32) -> (i32, i32) {
    %c0_i32 = arith.constant 0 : i32
    %c0_i32_0 = arith.constant 0 : i32
    return %arg0, %c0_i32 : i32, i32
  }
  func.func @transform_1(%arg0: i32) -> (i32, i32) {
    %c0_i32 = arith.constant 0 : i32
    %c0_i32_0 = arith.constant 0 : i32
    %c0_i32_1 = arith.constant 0 : i32
    return %c0_i32, %c0_i32_0 : i32, i32
  }
  func.func @transform_2(%arg0: i32) -> (i32, i32) {
    %c0_i32 = arith.constant 0 : i32
    %c0_i32_0 = arith.constant 0 : i32
    %c0_i32_1 = arith.constant 0 : i32
    return %c0_i32, %c0_i32_0 : i32, i32
  }
  func.func @transform_3(%arg0: i32) -> (i32, i32) {
    %c0_i32 = arith.constant 0 : i32
    %c0_i32_0 = arith.constant 0 : i32
    %c0_i32_1 = arith.constant 0 : i32
    return %c0_i32, %c0_i32_0 : i32, i32
  }
  func.func @transform_4(%arg0: i32) -> (i32, i32) {
    %c0_i32 = arith.constant 0 : i32
    %c0_i32_0 = arith.constant 0 : i32
    %c0_i32_1 = arith.constant 0 : i32
    return %c0_i32, %c0_i32_0 : i32, i32
  }
  func.func @transform_5(%arg0: i32) -> (i32, i32) {
    %c0_i32 = arith.constant 0 : i32
    %c0_i32_0 = arith.constant 0 : i32
    return %arg0, %c0_i32 : i32, i32
  }
}

</mosaic_0001>

<llo_original>
// kernel: tpu_custom_call.1
$region0: #{tpu_custom_call.1}
  #allocation0 [shape = 'u32[]', space=smem, size = 0x4, offset = 0x4, fixed_abs, tag = 'smem constant byte address 0x4 - core index']
  #allocation1 [shape = 'u32[72,128]{1,0:T(1,128)}', space=vmem, size = 0x9000, scoped, tag = 'internal scratch']
  %s0 = inlined_call_operand.vmem [shape: bf16[8,32], index: 0, kind: input, shape index: {}]
  %s1 = inlined_call_operand.vmem [shape: bf16[32,128], index: 1, kind: input, shape index: {}]
  %s2 = inlined_call_operand.vmem [shape: f32[1,128], index: 2, kind: input, shape index: {}]
  %s3 = inlined_call_operand.vmem [shape: bf16[128,4], index: 3, kind: input, shape index: {}]
  %s4 = inlined_call_operand.vmem [shape: f32[1,4], index: 4, kind: input, shape index: {}]
  %s5 = inlined_call_operand.vmem [shape: f32[8,4], index: 5, kind: output, shape index: {}]
  %s6 = sld [smem:[#allocation0]]
  $region30: #{tpu_custom_call.1} parent=0
    _
  %s8 = ssub.s32 1, %s6
  %s9 = scalar_select 0, %s8, %s6
  // Predicated region
  $region2: #{tpu_custom_call.1} parent=0 // pred_check
    _
  $region3: #{tpu_custom_call.1} parent=0 // pred_check_branch
    %11 = sbr.rel (0) target = $region5
  $region4: #{tpu_custom_call.1} parent=0 // pred_region
    _
  $region5: #{tpu_custom_call.1} parent=0 // pred_fallthru
    _
  // Predicated region
  $region6: #{tpu_custom_call.1} parent=0 // pred_check
    _
  $region7: #{tpu_custom_call.1} parent=0 // pred_check_branch
    %13 = sbr.rel (0) target = $region9
  $region8: #{tpu_custom_call.1} parent=0 // pred_region
    _
  $region9: #{tpu_custom_call.1} parent=0 // pred_fallthru
    _
  // Predicated region
  $region10: #{tpu_custom_call.1} parent=0 // pred_check
    _
  $region11: #{tpu_custom_call.1} parent=0 // pred_check_branch
    %15 = sbr.rel (0) target = $region13
  $region12: #{tpu_custom_call.1} parent=0 // pred_region
    _
  $region13: #{tpu_custom_call.1} parent=0 // pred_fallthru
    _
  // Predicated region
  $region14: #{tpu_custom_call.1} parent=0 // pred_check
    _
  $region15: #{tpu_custom_call.1} parent=0 // pred_check_branch
    %17 = sbr.rel (0) target = $region17
  $region16: #{tpu_custom_call.1} parent=0 // pred_region
    _
  $region17: #{tpu_custom_call.1} parent=0 // pred_fallthru
    _
  // Predicated region
  $region18: #{tpu_custom_call.1} parent=0 // pred_check
    _
  $region19: #{tpu_custom_call.1} parent=0 // pred_check_branch
    %19 = sbr.rel (0) target = $region21
  $region20: #{tpu_custom_call.1} parent=0 // pred_region
    _
  $region21: #{tpu_custom_call.1} parent=0 // pred_fallthru
    _
  %v21 = vld [vmem:[%s1] sm:$0xf]
  %v22 = vld [vmem:[%s1 + $0x4] sm:$0xf]
  %v23 = vld [vmem:[%s1 + $0x8] sm:$0xf]
  %v24 = vld [vmem:[%s1 + $0xc] sm:$0xf]
  %v25 = vld [vmem:[%s2] sm:$0x1]
  %v26 = vld [vmem:[%s3] sm:$0xf]
  %v27 = vld [vmem:[%s3 + $0x4] sm:$0xf]
  %v28 = vld [vmem:[%s3 + $0x8] sm:$0xf]
  %v29 = vld [vmem:[%s3 + $0xc] sm:$0xf]
  %v30 = vld [vmem:[%s3 + $0x10] sm:$0xf]
  %v31 = vld [vmem:[%s3 + $0x14] sm:$0xf]
  %v32 = vld [vmem:[%s3 + $0x18] sm:$0xf]
  %v33 = vld [vmem:[%s3 + $0x1c] sm:$0xf]
  %v34 = vld [vmem:[%s3 + $0x20] sm:$0xf]
  %v35 = vld [vmem:[%s3 + $0x24] sm:$0xf]
  %v36 = vld [vmem:[%s3 + $0x28] sm:$0xf]
  %v37 = vld [vmem:[%s3 + $0x2c] sm:$0xf]
  %v38 = vld [vmem:[%s3 + $0x30] sm:$0xf]
  %v39 = vld [vmem:[%s3 + $0x34] sm:$0xf]
  %v40 = vld [vmem:[%s3 + $0x38] sm:$0xf]
  %v41 = vld [vmem:[%s3 + $0x3c] sm:$0xf]
  %v42 = vld [vmem:[%s4] sm:$0x1]
  %v43 = vld [vmem:[%s0] sm:$0xf]
  %v45 = vperm.slane %v25, 0
  %v51 = vunpack.c.l.b16 %v21
  %v52 = vunpack.c.l.b16 %v22
  %v53 = vunpack.c.l.b16 %v23
  %v54 = vunpack.c.l.b16 %v24
  %v55 = vpack.c.b16 %v52, %v51
  %v56 = vpack.c.b16 %v54, %v53
  %vm59 = vcmask 261120
  %v61 = vsel %vm59, %v43, 0
  %63 = vmatpush.bf16.msra.mxu0 0
  %64 = vmatpush.bf16.msra.mxu0 0
  %65 = vmatpush.bf16.msra.mxu0 0
  %66 = vmatpush.bf16.msra.mxu0 0
  %67 = vmatpush.bf16.msra.mxu0 0
  %68 = vmatpush.bf16.msra.mxu0 0
  %69 = vmatpush.bf16.msra.mxu0 %v56
  %70 = vmatpush.bf16.msra.mxu0 %v55
  %71 = vmatmul.bf16.gmra.mxu0 %v61
  %v72 = vpop.f32.mrf.mxu0
  %v73 = vadd.f32 %v45, %v72
  %v74 = vpop.f32.mrf.mxu0
  %75 = vdwg.mxu0
  %v76 = vmax.f32 %v73, 0.0
  %v77 = vpack.c.bf16 %v76, %v76
  %v79 = vperm.slane %v42, 0
  %v97 = vunpack.c.l.b16 %v26
  %v98 = vunpack.c.l.b16 %v27
  %v99 = vunpack.c.l.b16 %v28
  %v100 = vunpack.c.l.b16 %v29
  %v101 = vunpack.c.l.b16 %v30
  %v102 = vunpack.c.l.b16 %v31
  %v103 = vunpack.c.l.b16 %v32
  %v104 = vunpack.c.l.b16 %v33
  %v105 = vunpack.c.l.b16 %v34
  %v106 = vunpack.c.l.b16 %v35
  %v107 = vunpack.c.l.b16 %v36
  %v108 = vunpack.c.l.b16 %v37
  %v109 = vunpack.c.l.b16 %v38
  %v110 = vunpack.c.l.b16 %v39
  %v111 = vunpack.c.l.b16 %v40
  %v112 = vunpack.c.l.b16 %v41
  %v113 = vpack.c.b16 %v98, %v97
  %v114 = vpack.c.b16 %v100, %v99
  %v115 = vpack.c.b16 %v102, %v101
  %v116 = vpack.c.b16 %v104, %v103
  %v117 = vpack.c.b16 %v106, %v105
  %v118 = vpack.c.b16 %v108, %v107
  %v119 = vpack.c.b16 %v110, %v109
  %v120 = vpack.c.b16 %v112, %v111
  %129 = vmatpush.bf16.msra.mxu0 %v120
  %130 = vmatpush.bf16.msra.mxu0 %v119
  %131 = vmatpush.bf16.msra.mxu0 %v118
  %132 = vmatpush.bf16.msra.mxu0 %v117
  %133 = vmatpush.bf16.msra.mxu0 %v116
  %134 = vmatpush.bf16.msra.mxu0 %v115
  %135 = vmatpush.bf16.msra.mxu0 %v114
  %136 = vmatpush.bf16.msra.mxu0 %v113
  %137 = vmatmul.bf16.gmra.mxu0 %v77
  %v138 = vpop.f32.mrf.mxu0
  %v139 = vadd.f32 %v79, %v138
  %v140 = vpop.f32.mrf.mxu0
  %141 = vdwg.mxu0
  %vm142 = vcmask 31744
  %143 = vst.msk [vmem:[%s5] sm:$0xff] %vm142, %v139
  // Predicated region
  $region22: #{tpu_custom_call.1} parent=0 // pred_check
    _
  $region23: #{tpu_custom_call.1} parent=0 // pred_check_branch
    %145 = sbr.rel (0) target = $region25
  $region24: #{tpu_custom_call.1} parent=0 // pred_region
    _
  $region25: #{tpu_custom_call.1} parent=0 // pred_fallthru
    _
  // Predicated region
  $region26: #{tpu_custom_call.1} parent=0 // pred_check
    _
  $region27: #{tpu_custom_call.1} parent=0 // pred_check_branch
    %147 = sbr.rel (0) target = $region29
  $region28: #{tpu_custom_call.1} parent=0 // pred_region
    _
  $region29: #{tpu_custom_call.1} parent=0 // pred_fallthru
    _

</llo_original>
